<compile_context>
chip_gen: v7x
topology: tpu7x:2x2x1
jax: 0.10.0
libtpu: 0.0.40
codegen_flags: <defaults>
</compile_context>

<pallas_src>
import jax
import jax.numpy as jnp
from jax.experimental import pallas as pl
from jax.experimental.pallas import tpu as pltpu


_REPS = 8                      # samples packed per 128-lane row (8 * 16 feat = 128 lanes)
_MAX_BLOCK_ROWS = 4096         # 4096 rows * 128 lanes * 4 B = 2 MiB per x buffer


def mlp_kernel(x_ref, p1_ref, p2_ref, p3_ref, o_ref):
    """x_ref: (bm, 128) lane-dense. p*_ref: block-diag weight stacked over a bias row."""
    def dense(a, p_ref):
        k = p_ref.shape[0] - 1                      # static
        w = p_ref[0:k, :]                           # (k, n)  block-diagonal weight
        b = p_ref[k:k + 1, :]                       # (1, n)  lane-tiled bias
        return jnp.dot(a, w, preferred_element_type=jnp.float32) + b

    h = jnp.maximum(dense(x_ref[...], p1_ref), 0.0)     # (bm, 192)
    h = jnp.maximum(dense(h, p2_ref), 0.0)               # (bm, 96)
    o_ref[...] = dense(h, p3_ref).astype(o_ref.dtype)    # (bm, 8)


def _block_diag(w, reps):
    """(k, n) -> (reps*k, reps*n) block-diagonal with `reps` copies of w."""
    k, n = w.shape
    eye = jnp.eye(reps, dtype=w.dtype)
    return (eye[:, None, :, None] * w[None, :, None, :]).reshape(reps * k, reps * n)


def pack_params(params, reps=_REPS):
    """One-time wrapper-side prep: block-diag weights + lane-tiled bias row per layer."""
    w1, b1, w2, b2, w3, b3 = params
    def pack(w, b):
        b = jnp.asarray(b, jnp.float32).reshape(1, -1)
        wd = _block_diag(jnp.asarray(w, jnp.float32), reps)       # (reps*in, reps*out)
        bt = jnp.tile(b, (1, reps))                               # (1, reps*out)
        return jnp.concatenate([wd, bt], axis=0)                  # (reps*in + 1, reps*out)
    return pack(w1, b1), pack(w2, b2), pack(w3, b3)


def net_forward(x, packed_params, *, block_rows=None):
    """Pallas forward pass of Net.

    x: (B, 16) float32.
    packed_params: output of pack_params(params).
    """
    p1, p2, p3 = packed_params
    B, f_in = x.shape
    assert f_in == 16
    reps = _REPS
    lanes = reps * f_in                 # 128
    out_cols = p3.shape[1]              # 8 (= reps * 1 output feature)

    rows = pl.cdiv(B, reps)             # logical packed rows needed
    if block_rows is None:
        block_rows = min(rows, _MAX_BLOCK_ROWS)
    grid = pl.cdiv(rows, block_rows)
    if grid > 1:
        # Tiled path: second-minor block dim must be a multiple of 8.
        block_rows = ((block_rows + 7) // 8) * 8
        grid = pl.cdiv(rows, block_rows)
    rows_padded = block_rows * grid
    B_pad = rows_padded * reps

    if B_pad != B:
        x = jnp.pad(x, ((0, B_pad - B), (0, 0)))
    xr = x.reshape(rows_padded, lanes)  # contiguous, free: 8 samples per 128-lane row

    out = pl.pallas_call(
        mlp_kernel,
        out_shape=jax.ShapeDtypeStruct((rows_padded, out_cols), jnp.float32),
        grid=(grid,),
        in_specs=[
            pl.BlockSpec((block_rows, lanes), lambda i: (i, 0)),   # lane-dense x tile
            pl.BlockSpec(p1.shape, lambda i: (0, 0)),              # resident params
            pl.BlockSpec(p2.shape, lambda i: (0, 0)),
            pl.BlockSpec(p3.shape, lambda i: (0, 0)),
        ],
        out_specs=pl.BlockSpec((block_rows, out_cols), lambda i: (i, 0)),
        compiler_params=pltpu.CompilerParams(
            dimension_semantics=("parallel",),        # shard batch tiles across TCs
            vmem_limit_bytes=32 * 1024 * 1024,        # ample for block_rows<=4096, v7x-safe
        ),
    )(xr, p1, p2, p3)

    # (rows, 8) row-major flatten == per-sample order -> (B, 1), then drop pad rows.
    return out.reshape(B_pad, 1)[:B]


def init_params(key):
    """PyTorch-Linear-style init U[-1/sqrt(fan_in), 1/sqrt(fan_in)].
    Weights stored (in_features, out_features); biases (1, out_features)."""
    dims = [(16, 24), (24, 12), (12, 1)]
    params = []
    for (fan_in, fan_out) in dims:
        key, kw, kb = jax.random.split(key, 3)
        bound = 1.0 / jnp.sqrt(fan_in)
        w = jax.random.uniform(kw, (fan_in, fan_out), jnp.float32, -bound, bound)
        b = jax.random.uniform(kb, (1, fan_out), jnp.float32, -bound, bound)
        params += [w, b]
    return tuple(params)


def net_forward_ref(x, params):
    w1, b1, w2, b2, w3, b3 = params
    h = jnp.maximum(x @ w1 + b1, 0.0)
    h = jnp.maximum(h @ w2 + b2, 0.0)
    return h @ w3 + b3


if __name__ == "__main__":
    key = jax.random.PRNGKey(0)
    kx1, kx2, kx3, kp = jax.random.split(key, 4)
    params = init_params(kp)
    packed = pack_params(params)

    # 1) Tiny batch (grid=1; padded up to one 8-sample packed row).
    x1 = jax.random.normal(kx1, (2, 16), jnp.float32)
    out1 = jax.block_until_ready(net_forward(x1, packed))
    ref1 = net_forward_ref(x1, params)
    assert out1.shape == (2, 1), out1.shape
    assert jnp.allclose(out1, ref1, atol=1e-4, rtol=1e-4), "small-batch mismatch"

    # 2) Batch not a multiple of 8 (exercises wrapper-side zero padding).
    x2 = jax.random.normal(kx2, (10, 16), jnp.float32)
    out2 = jax.block_until_ready(net_forward(x2, packed))
    ref2 = net_forward_ref(x2, params)
    assert out2.shape == (10, 1), out2.shape
    assert jnp.allclose(out2, ref2, atol=1e-4, rtol=1e-4), "padded-batch mismatch"

    # 3) Multi-tile grid path (force small block_rows -> grid of 4 lane-dense tiles).
    x3 = jax.random.normal(kx3, (2048, 16), jnp.float32)
    out3 = jax.block_until_ready(net_forward(x3, packed, block_rows=64))
    ref3 = net_forward_ref(x3, params)
    assert out3.shape == (2048, 1), out3.shape
    assert jnp.allclose(out3, ref3, atol=1e-4, rtol=1e-4), "tiled mismatch"

    # 4) Default tiling on the same batch (grid=1, full-batch tile).
    out4 = jax.block_until_ready(net_forward(x3, packed))
    assert jnp.allclose(out4, ref3, atol=1e-4, rtol=1e-4), "grid-1 mismatch"

    print("KERNEL_OK")
</pallas_src>

<mosaic_0001>
module attributes {stable_mosaic.version = 11 : i64} {
  func.func @mlp_kernel(%arg0: i32, %arg1: memref<1x128xf32, #tpu.memory_space<vmem>>, %arg2: memref<129x192xf32, #tpu.memory_space<vmem>>, %arg3: memref<193x96xf32, #tpu.memory_space<vmem>>, %arg4: memref<97x8xf32, #tpu.memory_space<vmem>>, %arg5: memref<1x8xf32, #tpu.memory_space<vmem>>) attributes {dimension_semantics = [#tpu.dimension_semantics<parallel>], iteration_bounds = array<i64: 1>, scalar_prefetch = 0 : i64, scratch_operands = 0 : i64, tpu.core_type = #tpu.core_type<tc>, window_params = [{transform_indices = @transform_0, window_bounds = array<i64: 1, 128>}, {pipeline_mode = #tpu.pipeline_mode<synchronous>, transform_indices = @transform_1, window_bounds = array<i64: 129, 192>}, {pipeline_mode = #tpu.pipeline_mode<synchronous>, transform_indices = @transform_2, window_bounds = array<i64: 193, 96>}, {pipeline_mode = #tpu.pipeline_mode<synchronous>, transform_indices = @transform_3, window_bounds = array<i64: 97, 8>}, {transform_indices = @transform_4, window_bounds = array<i64: 1, 8>}]} {
    %c0 = arith.constant 0 : index
    %c0_0 = arith.constant 0 : index
    %0 = vector.load %arg1[%c0, %c0_0] : memref<1x128xf32, #tpu.memory_space<vmem>>, vector<1x128xf32>
    %c0_1 = arith.constant 0 : index
    %c0_2 = arith.constant 0 : index
    %1 = vector.load %arg2[%c0_1, %c0_2] : memref<129x192xf32, #tpu.memory_space<vmem>>, vector<128x192xf32>
    %c128 = arith.constant 128 : index
    %c0_3 = arith.constant 0 : index
    %2 = vector.load %arg2[%c128, %c0_3] : memref<129x192xf32, #tpu.memory_space<vmem>>, vector<1x192xf32>
    %cst = arith.constant dense<0.000000e+00> : vector<1x192xf32>
    %3 = tpu.matmul %0, %1, %cst {dimension_numbers = #tpu.dot_dimension_numbers<[1], [0], [0], [1], [0, 0, 1, 1], [], []>} : vector<1x128xf32>, vector<128x192xf32>, vector<1x192xf32> -> vector<1x192xf32>
    %4 = arith.addf %3, %2 : vector<1x192xf32>
    %cst_4 = arith.constant 0.000000e+00 : f32
    %5 = vector.broadcast %cst_4 : f32 to vector<1x192xf32>
    %6 = arith.maximumf %4, %5 : vector<1x192xf32>
    %c0_5 = arith.constant 0 : index
    %c0_6 = arith.constant 0 : index
    %7 = vector.load %arg3[%c0_5, %c0_6] : memref<193x96xf32, #tpu.memory_space<vmem>>, vector<192x96xf32>
    %c192 = arith.constant 192 : index
    %c0_7 = arith.constant 0 : index
    %8 = vector.load %arg3[%c192, %c0_7] : memref<193x96xf32, #tpu.memory_space<vmem>>, vector<1x96xf32>
    %cst_8 = arith.constant dense<0.000000e+00> : vector<1x96xf32>
    %9 = tpu.matmul %6, %7, %cst_8 {dimension_numbers = #tpu.dot_dimension_numbers<[1], [0], [0], [1], [0, 0, 1, 1], [], []>} : vector<1x192xf32>, vector<192x96xf32>, vector<1x96xf32> -> vector<1x96xf32>
    %10 = arith.addf %9, %8 : vector<1x96xf32>
    %cst_9 = arith.constant 0.000000e+00 : f32
    %11 = vector.broadcast %cst_9 : f32 to vector<1x96xf32>
    %12 = arith.maximumf %10, %11 : vector<1x96xf32>
    %c0_10 = arith.constant 0 : index
    %c0_11 = arith.constant 0 : index
    %13 = vector.load %arg4[%c0_10, %c0_11] : memref<97x8xf32, #tpu.memory_space<vmem>>, vector<96x8xf32>
    %c96 = arith.constant 96 : index
    %c0_12 = arith.constant 0 : index
    %14 = vector.load %arg4[%c96, %c0_12] : memref<97x8xf32, #tpu.memory_space<vmem>>, vector<1x8xf32>
    %cst_13 = arith.constant dense<0.000000e+00> : vector<1x8xf32>
    %15 = tpu.matmul %12, %13, %cst_13 {dimension_numbers = #tpu.dot_dimension_numbers<[1], [0], [0], [1], [0, 0, 1, 1], [], []>} : vector<1x96xf32>, vector<96x8xf32>, vector<1x8xf32> -> vector<1x8xf32>
    %16 = arith.addf %15, %14 : vector<1x8xf32>
    %c0_14 = arith.constant 0 : index
    %c0_15 = arith.constant 0 : index
    %17 = vector.load %arg5[%c0_14, %c0_15] : memref<1x8xf32, #tpu.memory_space<vmem>>, vector<1x8xf32>
    tpu.vector_store %arg5[%c0_14, %c0_15], %16 {strides = array<i32>} : memref<1x8xf32, #tpu.memory_space<vmem>>, vector<1x8xf32>,
    return
  }
  func.func @transform_0(%arg0: i32) -> (i32, i32) {
    %c0_i32 = arith.constant 0 : i32
    %c0_i32_0 = arith.constant 0 : i32
    return %arg0, %c0_i32 : i32, i32
  }
  func.func @transform_1(%arg0: i32) -> (i32, i32) {
    %c0_i32 = arith.constant 0 : i32
    %c0_i32_0 = arith.constant 0 : i32
    %c0_i32_1 = arith.constant 0 : i32
    return %c0_i32, %c0_i32_0 : i32, i32
  }
  func.func @transform_2(%arg0: i32) -> (i32, i32) {
    %c0_i32 = arith.constant 0 : i32
    %c0_i32_0 = arith.constant 0 : i32
    %c0_i32_1 = arith.constant 0 : i32
    return %c0_i32, %c0_i32_0 : i32, i32
  }
  func.func @transform_3(%arg0: i32) -> (i32, i32) {
    %c0_i32 = arith.constant 0 : i32
    %c0_i32_0 = arith.constant 0 : i32
    %c0_i32_1 = arith.constant 0 : i32
    return %c0_i32, %c0_i32_0 : i32, i32
  }
  func.func @transform_4(%arg0: i32) -> (i32, i32) {
    %c0_i32 = arith.constant 0 : i32
    %c0_i32_0 = arith.constant 0 : i32
    return %arg0, %c0_i32 : i32, i32
  }
}

</mosaic_0001>

<llo_original>
// kernel: tpu_custom_call.1
$region0: #{tpu_custom_call.1}
  #allocation0 [shape = 'u32[]', space=smem, size = 0x4, offset = 0x4, fixed_abs, tag = 'smem constant byte address 0x4 - core index']
  #allocation1 [shape = 'u32[144,128]{1,0:T(1,128)}', space=vmem, size = 0x12000, scoped, tag = 'internal scratch']
  %s0 = inlined_call_operand.vmem [shape: f32[1,128], index: 0, kind: input, shape index: {}]
  %s1 = inlined_call_operand.vmem [shape: f32[129,192], index: 1, kind: input, shape index: {}]
  %s2 = inlined_call_operand.vmem [shape: f32[193,96], index: 2, kind: input, shape index: {}]
  %s3 = inlined_call_operand.vmem [shape: f32[97,8], index: 3, kind: input, shape index: {}]
  %s4 = inlined_call_operand.hbm [shape: f32[1,8], index: 4, kind: output, shape index: {}]
  %s5 = sld [smem:[#allocation0]]
  $region26: #{tpu_custom_call.1} parent=0
    _
  %s7 = ssub.s32 1, %s5
  %s8 = scalar_select 0, %s7, %s5
  $region1: #{tpu_custom_call.1} parent=0
    #allocation2 [shape = 'u8[512]{0}', space=vmem, size = 0x400, scoped, tag = 'output window, operand 0, single buffered']
    #allocation3 [shape = 's32[1]{0}', space=sflag, size = 0x4, scoped, tag = 'scoped memory for tpu_custom_call.1']
    %9 = vsyncpa [#allocation3], 0
    // Predicated region
    $region2: #{tpu_custom_call.1} parent=1 // pred_check
      _
    $region3: #{tpu_custom_call.1} parent=1 // pred_check_branch
      %11 = sbr.rel (0) target = $region5
    $region4: #{tpu_custom_call.1} parent=1 // pred_region
      _
    $region5: #{tpu_custom_call.1} parent=1 // pred_fallthru
      _
    // Predicated region
    $region6: #{tpu_custom_call.1} parent=1 // pred_check
      _
    $region7: #{tpu_custom_call.1} parent=1 // pred_check_branch
      %13 = sbr.rel (0) target = $region9
    $region8: #{tpu_custom_call.1} parent=1 // pred_region
      _
    $region9: #{tpu_custom_call.1} parent=1 // pred_fallthru
      _
    // Predicated region
    $region10: #{tpu_custom_call.1} parent=1 // pred_check
      _
    $region11: #{tpu_custom_call.1} parent=1 // pred_check_branch
      %15 = sbr.rel (0) target = $region13
    $region12: #{tpu_custom_call.1} parent=1 // pred_region
      _
    $region13: #{tpu_custom_call.1} parent=1 // pred_fallthru
      _
    // Predicated region
    $region14: #{tpu_custom_call.1} parent=1 // pred_check
      _
    $region15: #{tpu_custom_call.1} parent=1 // pred_check_branch
      %17 = sbr.rel (0) target = $region17
    $region16: #{tpu_custom_call.1} parent=1 // pred_region
      _
    $region17: #{tpu_custom_call.1} parent=1 // pred_fallthru
      _
    %v18 = vld [vmem:[%s0] sm:$0x1]
    %v19 = vld [vmem:[%s1] sm:$0xff]
    %v20 = vld [vmem:[%s1 + $0x8] sm:$0xff]
    %v21 = vld [vmem:[%s1 + $0x10] sm:$0xff]
    %v22 = vld [vmem:[%s1 + $0x18] sm:$0xff]
    %v23 = vld [vmem:[%s1 + $0x20] sm:$0xff]
    %v24 = vld [vmem:[%s1 + $0x28] sm:$0xff]
    %v25 = vld [vmem:[%s1 + $0x30] sm:$0xff]
    %v26 = vld [vmem:[%s1 + $0x38] sm:$0xff]
    %v27 = vld [vmem:[%s1 + $0x40] sm:$0xff]
    %v28 = vld [vmem:[%s1 + $0x48] sm:$0xff]
    %v29 = vld [vmem:[%s1 + $0x50] sm:$0xff]
    %v30 = vld [vmem:[%s1 + $0x58] sm:$0xff]
    %v31 = vld [vmem:[%s1 + $0x60] sm:$0xff]
    %v32 = vld [vmem:[%s1 + $0x68] sm:$0xff]
    %v33 = vld [vmem:[%s1 + $0x70] sm:$0xff]
    %v34 = vld [vmem:[%s1 + $0x78] sm:$0xff]
    %v35 = vld [vmem:[%s1 + $0x80] sm:$0xff]
    %v36 = vld [vmem:[%s1 + $0x88] sm:$0xff]
    %v37 = vld [vmem:[%s1 + $0x90] sm:$0xff]
    %v38 = vld [vmem:[%s1 + $0x98] sm:$0xff]
    %v39 = vld [vmem:[%s1 + $0xa0] sm:$0xff]
    %v40 = vld [vmem:[%s1 + $0xa8] sm:$0xff]
    %v41 = vld [vmem:[%s1 + $0xb0] sm:$0xff]
    %v42 = vld [vmem:[%s1 + $0xb8] sm:$0xff]
    %v43 = vld [vmem:[%s1 + $0xc0] sm:$0xff]
    %v44 = vld [vmem:[%s1 + $0xc8] sm:$0xff]
    %v45 = vld [vmem:[%s1 + $0xd0] sm:$0xff]
    %v46 = vld [vmem:[%s1 + $0xd8] sm:$0xff]
    %v47 = vld [vmem:[%s1 + $0xe0] sm:$0xff]
    %v48 = vld [vmem:[%s1 + $0xe8] sm:$0xff]
    %v49 = vld [vmem:[%s1 + $0xf0] sm:$0xff]
    %v50 = vld [vmem:[%s1 + $0xf8] sm:$0xff]
    %s51 = scalar_lea.vmem %s1, 256
    %v52 = vld [vmem:[%s51] ss:$8 sm:$0x3]
    %v54 = vlaneseq
    %v55 = vshrl.u32 %v54, 7
    %v56 = vsub.s32 0, %v55
    %v57 = vrot.slane %v52, %v56
    %v58 = vlaneseq
    %v59 = vshrl.u32 %v58, 7
    %v60 = vsub.s32 1, %v59
    %v61 = vrot.slane %v52, %v60
    %64 = vmatprep.subr.mxu0 %v20
    %65 = vmatpush1.msra.mxu0 %v19
    %66 = vmatprep.subr.mxu0 %v22
    %67 = vmatpush1.msra.mxu0 %v21
    %68 = vmatprep.subr.mxu0 %v24
    %69 = vmatpush1.msra.mxu0 %v23
    %70 = vmatprep.subr.mxu0 %v26
    %71 = vmatpush1.msra.mxu0 %v25
    %72 = vmatprep.subr.mxu0 %v28
    %73 = vmatpush1.msra.mxu0 %v27
    %74 = vmatprep.subr.mxu0 %v30
    %75 = vmatpush1.msra.mxu0 %v29
    %76 = vmatprep.subr.mxu0 %v32
    %77 = vmatpush1.msra.mxu0 %v31
    %78 = vmatprep.subr.mxu0 %v34
    %79 = vmatpush1.msra.mxu0 %v33
    %80 = vmatprep.subr.mxu0 %v36
    %81 = vmatpush1.msra.mxu0 %v35
    %82 = vmatprep.subr.mxu0 %v38
    %83 = vmatpush1.msra.mxu0 %v37
    %84 = vmatprep.subr.mxu0 %v40
    %85 = vmatpush1.msra.mxu0 %v39
    %86 = vmatprep.subr.mxu0 %v42
    %87 = vmatpush1.msra.mxu0 %v41
    %88 = vmatprep.subr.mxu0 %v44
    %89 = vmatpush1.msra.mxu0 %v43
    %90 = vmatprep.subr.mxu0 %v46
    %91 = vmatpush1.msra.mxu0 %v45
    %92 = vmatprep.subr.mxu0 %v48
    %93 = vmatpush1.msra.mxu0 %v47
    %94 = vmatprep.subr.mxu0 %v50
    %95 = vmatpush1.msra.mxu0 %v49
    %96 = vmatprep.subr.mxu0 0.0
    %97 = vmatpush1.msra.mxu0 0.0
    %98 = vmatprep.subr.mxu0 0.0
    %99 = vmatpush1.msra.mxu0 0.0
    %100 = vmatprep.subr.mxu0 0.0
    %101 = vmatpush1.msra.mxu0 0.0
    %102 = vmatprep.subr.mxu0 0.0
    %103 = vmatpush1.msra.mxu0 0.0
    %104 = vmatprep.subr.mxu0 0.0
    %105 = vmatpush1.msra.mxu0 0.0
    %106 = vmatprep.subr.mxu0 0.0
    %107 = vmatpush1.msra.mxu0 0.0
    %108 = vmatprep.subr.mxu0 0.0
    %109 = vmatpush1.msra.mxu0 0.0
    %110 = vmatprep.subr.mxu0 0.0
    %111 = vmatpush1.msra.mxu0 0.0
    %112 = vmatprep.subr.mxu0 0.0
    %113 = vmatpush1.msra.mxu0 0.0
    %114 = vmatprep.subr.mxu0 0.0
    %115 = vmatpush1.msra.mxu0 0.0
    %116 = vmatprep.subr.mxu0 0.0
    %117 = vmatpush1.msra.mxu0 0.0
    %118 = vmatprep.subr.mxu0 0.0
    %119 = vmatpush1.msra.mxu0 0.0
    %120 = vmatprep.subr.mxu0 0.0
    %121 = vmatpush1.msra.mxu0 0.0
    %122 = vmatprep.subr.mxu0 0.0
    %123 = vmatpush1.msra.mxu0 0.0
    %124 = vmatprep.subr.mxu0 0.0
    %125 = vmatpush1.msra.mxu0 0.0
    %126 = vmatprep.subr.mxu0 0.0
    %127 = vmatpush1.msra.mxu0 0.0
    %128 = vmatprep.mubr.f32.mxu0 0.0
    %129 = vmatmul.mubr.f32.gmra.mrb[0].mxu0 %v18
    %v130 = vpop.f32.mrb[0].mxu0
    %v131 = vadd.f32 %v57, %v130
    %v132 = vpop.f32.mrb[0].mxu0
    %v133 = vadd.f32 %v61, %v132
    %134 = vdwg.mxu0
    %v135 = vmax.f32 %v131, 0.0
    %v136 = vmax.f32 %v133, 0.0
    %v137 = vld [vmem:[%s2] sm:$0xff]
    %v138 = vld [vmem:[%s2 + $0x8] sm:$0xff]
    %v139 = vld [vmem:[%s2 + $0x10] sm:$0xff]
    %v140 = vld [vmem:[%s2 + $0x18] sm:$0xff]
    %v141 = vld [vmem:[%s2 + $0x20] sm:$0xff]
    %v142 = vld [vmem:[%s2 + $0x28] sm:$0xff]
    %v143 = vld [vmem:[%s2 + $0x30] sm:$0xff]
    %v144 = vld [vmem:[%s2 + $0x38] sm:$0xff]
    %v145 = vld [vmem:[%s2 + $0x40] sm:$0xff]
    %v146 = vld [vmem:[%s2 + $0x48] sm:$0xff]
    %v147 = vld [vmem:[%s2 + $0x50] sm:$0xff]
    %v148 = vld [vmem:[%s2 + $0x58] sm:$0xff]
    %v149 = vld [vmem:[%s2 + $0x60] sm:$0xff]
    %v150 = vld [vmem:[%s2 + $0x68] sm:$0xff]
    %v151 = vld [vmem:[%s2 + $0x70] sm:$0xff]
    %v152 = vld [vmem:[%s2 + $0x78] sm:$0xff]
    %v153 = vld [vmem:[%s2 + $0x80] sm:$0xff]
    %v154 = vld [vmem:[%s2 + $0x88] sm:$0xff]
    %v155 = vld [vmem:[%s2 + $0x90] sm:$0xff]
    %v156 = vld [vmem:[%s2 + $0x98] sm:$0xff]
    %v157 = vld [vmem:[%s2 + $0xa0] sm:$0xff]
    %v158 = vld [vmem:[%s2 + $0xa8] sm:$0xff]
    %v159 = vld [vmem:[%s2 + $0xb0] sm:$0xff]
    %v160 = vld [vmem:[%s2 + $0xb8] sm:$0xff]
    %v161 = vld [vmem:[%s2 + $0xc0] sm:$0x1]
    %vm162 = vcmask 523264
    %v164 = vsel %vm162, %v136, 0
    %166 = vmatprep.subr.mxu0 0.0
    %167 = vmatpush1.msra.mxu0 %v137
    %168 = vmatprep.subr.mxu0 0.0
    %169 = vmatpush1.msra.mxu0 %v138
    %170 = vmatprep.subr.mxu0 0.0
    %171 = vmatpush1.msra.mxu0 %v139
    %172 = vmatprep.subr.mxu0 0.0
    %173 = vmatpush1.msra.mxu0 %v140
    %174 = vmatprep.subr.mxu0 0.0
    %175 = vmatpush1.msra.mxu0 %v141
    %176 = vmatprep.subr.mxu0 0.0
    %177 = vmatpush1.msra.mxu0 %v142
    %178 = vmatprep.subr.mxu0 0.0
    %179 = vmatpush1.msra.mxu0 %v143
    %180 = vmatprep.subr.mxu0 0.0
    %181 = vmatpush1.msra.mxu0 %v144
    %182 = vmatprep.subr.mxu0 0.0
    %183 = vmatpush1.msra.mxu0 %v145
    %184 = vmatprep.subr.mxu0 0.0
    %185 = vmatpush1.msra.mxu0 %v146
    %186 = vmatprep.subr.mxu0 0.0
    %187 = vmatpush1.msra.mxu0 %v147
    %188 = vmatprep.subr.mxu0 0.0
    %189 = vmatpush1.msra.mxu0 %v148
    %190 = vmatprep.subr.mxu0 0.0
    %191 = vmatpush1.msra.mxu0 %v149
    %192 = vmatprep.subr.mxu0 0.0
    %193 = vmatpush1.msra.mxu0 %v150
    %194 = vmatprep.subr.mxu0 0.0
    %195 = vmatpush1.msra.mxu0 %v151
    %196 = vmatprep.subr.mxu0 0.0
    %197 = vmatpush1.msra.mxu0 %v152
    %198 = vmatprep.subr.mxu0 0.0
    %199 = vmatpush1.msra.mxu0 %v153
    %200 = vmatprep.subr.mxu0 0.0
    %201 = vmatpush1.msra.mxu0 %v154
    %202 = vmatprep.subr.mxu0 0.0
    %203 = vmatpush1.msra.mxu0 %v155
    %204 = vmatprep.subr.mxu0 0.0
    %205 = vmatpush1.msra.mxu0 %v156
    %206 = vmatprep.subr.mxu0 0.0
    %207 = vmatpush1.msra.mxu0 %v157
    %208 = vmatprep.subr.mxu0 0.0
    %209 = vmatpush1.msra.mxu0 %v158
    %210 = vmatprep.subr.mxu0 0.0
    %211 = vmatpush1.msra.mxu0 %v159
    %212 = vmatprep.subr.mxu0 0.0
    %213 = vmatpush1.msra.mxu0 %v160
    %214 = vmatprep.subr.mxu0 0.0
    %215 = vmatpush1.msra.mxu0 0.0
    %216 = vmatprep.subr.mxu0 0.0
    %217 = vmatpush1.msra.mxu0 0.0
    %218 = vmatprep.subr.mxu0 0.0
    %219 = vmatpush1.msra.mxu0 0.0
    %220 = vmatprep.subr.mxu0 0.0
    %221 = vmatpush1.msra.mxu0 0.0
    %222 = vmatprep.subr.mxu0 0.0
    %223 = vmatpush1.msra.mxu0 0.0
    %224 = vmatprep.subr.mxu0 0.0
    %225 = vmatpush1.msra.mxu0 0.0
    %226 = vmatprep.subr.mxu0 0.0
    %227 = vmatpush1.msra.mxu0 0.0
    %228 = vmatprep.subr.mxu0 0.0
    %229 = vmatpush1.msra.mxu0 0.0
    %230 = vmatprep.mubr.f32.mxu0 %v164
    %231 = vmatmul.mubr.f32.gmra.mrb[0].mxu0 %v135
    %v232 = vpop.f32.mrb[0].mxu0
    %v233 = vadd.f32 %v161, %v232
    %v234 = vpop.f32.mrb[0].mxu0
    %235 = vdwg.mxu0
    %v236 = vmax.f32 %v233, 0.0
    %v237 = vld [vmem:[%s3] sm:$0xff]
    %v238 = vld [vmem:[%s3 + $0x8] sm:$0xff]
    %v239 = vld [vmem:[%s3 + $0x10] sm:$0xff]
    %v240 = vld [vmem:[%s3 + $0x18] sm:$0xff]
    %v241 = vld [vmem:[%s3 + $0x20] sm:$0xff]
    %v242 = vld [vmem:[%s3 + $0x28] sm:$0xff]
    %v243 = vld [vmem:[%s3 + $0x30] sm:$0xff]
    %v244 = vld [vmem:[%s3 + $0x38] sm:$0xff]
    %v245 = vld [vmem:[%s3 + $0x40] sm:$0xff]
    %v246 = vld [vmem:[%s3 + $0x48] sm:$0xff]
    %v247 = vld [vmem:[%s3 + $0x50] sm:$0xff]
    %v248 = vld [vmem:[%s3 + $0x58] sm:$0xff]
    %v249 = vld [vmem:[%s3 + $0x60] sm:$0x1]
    %vm250 = vcmask 785408
    %v252 = vsel %vm250, %v236, 0
    %254 = vmatprep.subr.mxu0 0.0
    %255 = vmatpush1.msra.mxu0 %v237
    %256 = vmatprep.subr.mxu0 0.0
    %257 = vmatpush1.msra.mxu0 %v238
    %258 = vmatprep.subr.mxu0 0.0
    %259 = vmatpush1.msra.mxu0 %v239
    %260 = vmatprep.subr.mxu0 0.0
    %261 = vmatpush1.msra.mxu0 %v240
    %262 = vmatprep.subr.mxu0 0.0
    %263 = vmatpush1.msra.mxu0 %v241
    %264 = vmatprep.subr.mxu0 0.0
    %265 = vmatpush1.msra.mxu0 %v242
    %266 = vmatprep.subr.mxu0 0.0
    %267 = vmatpush1.msra.mxu0 %v243
    %268 = vmatprep.subr.mxu0 0.0
    %269 = vmatpush1.msra.mxu0 %v244
    %270 = vmatprep.subr.mxu0 0.0
    %271 = vmatpush1.msra.mxu0 %v245
    %272 = vmatprep.subr.mxu0 0.0
    %273 = vmatpush1.msra.mxu0 %v246
    %274 = vmatprep.subr.mxu0 0.0
    %275 = vmatpush1.msra.mxu0 %v247
    %276 = vmatprep.subr.mxu0 0.0
    %277 = vmatpush1.msra.mxu0 %v248
    %278 = vmatprep.subr.mxu0 0.0
    %279 = vmatpush1.msra.mxu0 0.0
    %280 = vmatprep.subr.mxu0 0.0
    %281 = vmatpush1.msra.mxu0 0.0
    %282 = vmatprep.subr.mxu0 0.0
    %283 = vmatpush1.msra.mxu0 0.0
    %284 = vmatprep.subr.mxu0 0.0
    %285 = vmatpush1.msra.mxu0 0.0
    %286 = vmatprep.subr.mxu0 0.0
    %287 = vmatpush1.msra.mxu0 0.0
    %288 = vmatprep.subr.mxu0 0.0
    %289 = vmatpush1.msra.mxu0 0.0
    %290 = vmatprep.subr.mxu0 0.0
    %291 = vmatpush1.msra.mxu0 0.0
    %292 = vmatprep.subr.mxu0 0.0
    %293 = vmatpush1.msra.mxu0 0.0
    %294 = vmatprep.subr.mxu0 0.0
    %295 = vmatpush1.msra.mxu0 0.0
    %296 = vmatprep.subr.mxu0 0.0
    %297 = vmatpush1.msra.mxu0 0.0
    %298 = vmatprep.subr.mxu0 0.0
    %299 = vmatpush1.msra.mxu0 0.0
    %300 = vmatprep.subr.mxu0 0.0
    %301 = vmatpush1.msra.mxu0 0.0
    %302 = vmatprep.subr.mxu0 0.0
    %303 = vmatpush1.msra.mxu0 0.0
    %304 = vmatprep.subr.mxu0 0.0
    %305 = vmatpush1.msra.mxu0 0.0
    %306 = vmatprep.subr.mxu0 0.0
    %307 = vmatpush1.msra.mxu0 0.0
    %308 = vmatprep.subr.mxu0 0.0
    %309 = vmatpush1.msra.mxu0 0.0
    %310 = vmatprep.subr.mxu0 0.0
    %311 = vmatpush1.msra.mxu0 0.0
    %312 = vmatprep.subr.mxu0 0.0
    %313 = vmatpush1.msra.mxu0 0.0
    %314 = vmatprep.subr.mxu0 0.0
    %315 = vmatpush1.msra.mxu0 0.0
    %316 = vmatprep.subr.mxu0 0.0
    %317 = vmatpush1.msra.mxu0 0.0
    %318 = vmatprep.mubr.f32.mxu0 0.0
    %319 = vmatmul.mubr.f32.gmra.mrb[0].mxu0 %v252
    %v320 = vpop.f32.mrb[0].mxu0
    %v321 = vadd.f32 %v249, %v320
    %v322 = vpop.f32.mrb[0].mxu0
    %323 = vdwg.mxu0
    %vm324 = vcmask 57344
    %325 = vst.msk [vmem:[#allocation2] sm:$0x1] %vm324, %v321
    // Predicated region
    $region18: #{tpu_custom_call.1} parent=1 // pred_check
      _
    $region19: #{tpu_custom_call.1} parent=1 // pred_check_branch
      %327 = sbr.rel (0) target = $region21
    $region20: #{tpu_custom_call.1} parent=1 // pred_region
      %s329 = ssub.s32 16, 16
      %330 = vsyncadd [#allocation3], %s329
      %s332 = sshll.u32 [#allocation2], 4
      %s333 = int_to_ptr.vmem [resolvable:$true] %s332
      %335 = dma.vmem_to_hbm [thread:$0]  %s333, 16, %s4, [#allocation3]
    $region21: #{tpu_custom_call.1} parent=1 // pred_fallthru
      _
    // Predicated region
    $region22: #{tpu_custom_call.1} parent=1 // pred_check
      _
    $region23: #{tpu_custom_call.1} parent=1 // pred_check_branch
      %337 = sbr.rel (0) target = $region25
    $region24: #{tpu_custom_call.1} parent=1 // pred_region
      %338 = dma.done [#allocation3], 16
    $region25: #{tpu_custom_call.1} parent=1 // pred_fallthru
      _
    %339 = vsyncpa [#allocation3], 1

</llo_original>
